<compile_context>
chip_gen: v5e
topology: v5e:2x2
jax: 0.10.0
libtpu: 0.0.40
codegen_flags: <defaults>
</compile_context>

<pallas_src>
import functools

import jax
import jax.numpy as jnp
from jax.experimental import pallas as pl
from jax.experimental.pallas import tpu as pltpu

_LANES = 128


def _fast_recip(x):
    # EUP approximate reciprocal (otherwise-idle slot) + one Newton-Raphson
    # refinement (two cheap VPU mults) -> ~f32 accuracy without a VALU divide.
    r = pl.reciprocal(x, approx=True)
    return r * (2.0 - x * r)


def _iou_loss_kernel(p_ref, t_ref, o_ref, *, loss_type):
    # p_ref / t_ref: (4, TR, 128) f32 blocks; components = [cx, cy, w, h].
    # Indexing the leading axis yields dense (TR, 128) operands (full vregs).
    px, py, pw, ph = p_ref[0], p_ref[1], p_ref[2], p_ref[3]
    tx, ty, tw, th = t_ref[0], t_ref[1], t_ref[2], t_ref[3]

    phw, phh = pw * 0.5, ph * 0.5
    thw, thh = tw * 0.5, th * 0.5

    # intersection top-left / bottom-right
    tl_x = jnp.maximum(px - phw, tx - thw)
    tl_y = jnp.maximum(py - phh, ty - thh)
    br_x = jnp.minimum(px + phw, tx + thw)
    br_y = jnp.minimum(py + phh, ty + thh)

    area_p = pw * ph
    area_g = tw * th

    en = jnp.where((tl_x < br_x) & (tl_y < br_y), 1.0, 0.0)
    area_i = (br_x - tl_x) * (br_y - tl_y) * en
    iou = area_i * _fast_recip(area_p + area_g - area_i + 1e-16)

    if loss_type == "iou":
        loss = 1.0 - iou * iou
    elif loss_type == "giou":
        c_tl_x = jnp.minimum(px - phw, tx - thw)
        c_tl_y = jnp.minimum(py - phh, ty - thh)
        c_br_x = jnp.maximum(px + phw, tx + thw)
        c_br_y = jnp.maximum(py + phh, ty + thh)
        area_c = (c_br_x - c_tl_x) * (c_br_y - c_tl_y)
        giou = iou - (area_c - area_i) * _fast_recip(jnp.maximum(area_c, 1e-16))
        loss = 1.0 - jnp.clip(giou, -1.0, 1.0)
    else:
        raise ValueError(f"unknown loss_type: {loss_type}")

    o_ref[...] = loss


def iou_loss(pred, target, reduction="none", loss_type="iou", block_rows=256):
    """Pallas implementation of IOUloss.forward.

    pred / target: any shape reshapable to (-1, 4) with boxes [cx, cy, w, h].
    block_rows: sublane rows (of 128 boxes each) per grid step; 256 rows
        -> 32K boxes / 512 KiB per input block.
    """
    assert pred.shape[0] == target.shape[0]
    pred = pred.reshape(-1, 4).astype(jnp.float32)
    target = target.reshape(-1, 4).astype(jnp.float32)
    n = pred.shape[0]

    # Rows of 128 boxes; pad the row count up to a multiple of the block so
    # every block is a dense (TR, 128) slab with TR a multiple of 8.
    rows = pl.cdiv(n, _LANES)
    tr = min(block_rows, ((rows + 7) // 8) * 8)
    rows_pad = ((rows + tr - 1) // tr) * tr
    n_pad = rows_pad * _LANES

    def to_slab(x):
        # single fused pad + transpose + reshape -> (4, rows_pad, 128)
        return jnp.pad(x, ((0, n_pad - n), (0, 0))).T.reshape(4, rows_pad, _LANES)

    p_t = to_slab(pred)
    t_t = to_slab(target)

    out = pl.pallas_call(
        functools.partial(_iou_loss_kernel, loss_type=loss_type),
        out_shape=jax.ShapeDtypeStruct((rows_pad, _LANES), jnp.float32),
        grid_spec=pltpu.PrefetchScalarGridSpec(
            num_scalar_prefetch=0,
            grid=(rows_pad // tr,),
            in_specs=[
                pl.BlockSpec((4, tr, _LANES), lambda i: (0, i, 0)),
                pl.BlockSpec((4, tr, _LANES), lambda i: (0, i, 0)),
            ],
            out_specs=pl.BlockSpec((tr, _LANES), lambda i: (i, 0)),
        ),
        compiler_params=pltpu.CompilerParams(
            dimension_semantics=("parallel",)),
    )(p_t, t_t)

    loss = out.reshape(-1)[:n]
    # TODO(synk): for reduction='sum'/'mean' the reduction could be fused into
    # the kernel (accumulator + in-kernel masking of the padded tail) to save
    # the loss-row writeback and the second XLA reduction pass.
    if reduction == "mean":
        loss = loss.mean()
    elif reduction == "sum":
        loss = loss.sum()
    return loss


def _iou_loss_ref(pred, target, reduction="none", loss_type="iou"):
    """Pure-JAX reference (mirrors the PyTorch module)."""
    pred = pred.reshape(-1, 4).astype(jnp.float32)
    target = target.reshape(-1, 4).astype(jnp.float32)
    tl = jnp.maximum(pred[:, :2] - pred[:, 2:] / 2, target[:, :2] - target[:, 2:] / 2)
    br = jnp.minimum(pred[:, :2] + pred[:, 2:] / 2, target[:, :2] + target[:, 2:] / 2)
    area_p = jnp.prod(pred[:, 2:], axis=1)
    area_g = jnp.prod(target[:, 2:], axis=1)
    en = jnp.prod((tl < br).astype(jnp.float32), axis=1)
    area_i = jnp.prod(br - tl, axis=1) * en
    iou = area_i / (area_p + area_g - area_i + 1e-16)
    if loss_type == "iou":
        loss = 1 - iou ** 2
    elif loss_type == "giou":
        c_tl = jnp.minimum(pred[:, :2] - pred[:, 2:] / 2, target[:, :2] - target[:, 2:] / 2)
        c_br = jnp.maximum(pred[:, :2] + pred[:, 2:] / 2, target[:, :2] + target[:, 2:] / 2)
        area_c = jnp.prod(c_br - c_tl, axis=1)
        giou = iou - (area_c - area_i) / jnp.maximum(area_c, 1e-16)
        loss = 1 - jnp.clip(giou, -1.0, 1.0)
    if reduction == "mean":
        loss = loss.mean()
    elif reduction == "sum":
        loss = loss.sum()
    return loss


def _make_boxes(key, shape):
    k1, k2 = jax.random.split(key)
    xy = jax.random.uniform(k1, shape + (2,), minval=0.0, maxval=10.0)
    wh = jax.random.uniform(k2, shape + (2,), minval=1.0, maxval=5.0)
    return jnp.concatenate([xy, wh], axis=-1)


if __name__ == "__main__":
    key = jax.random.PRNGKey(0)
    k1, k2, k3, k4 = jax.random.split(key, 4)

    # --- small case (default module config): (B=2, A=8, 4) -> 16 boxes ---
    B, A = 2, 8
    pred = _make_boxes(k1, (B, A))
    target = _make_boxes(k2, (B, A))

    loss = jax.block_until_ready(iou_loss(pred, target, reduction="none", loss_type="iou"))
    ref = _iou_loss_ref(pred, target, reduction="none", loss_type="iou")
    assert loss.shape == (B * A,)
    assert jnp.allclose(loss, ref, atol=1e-4, rtol=1e-4)

    # giou + mean reduction on the same small batch
    loss_g = jax.block_until_ready(iou_loss(pred, target, reduction="mean", loss_type="giou"))
    ref_g = _iou_loss_ref(pred, target, reduction="mean", loss_type="giou")
    assert jnp.allclose(loss_g, ref_g, atol=1e-4, rtol=1e-4)

    # --- medium case to exercise the multi-block grid + padded tail ---
    N = 33000  # rows=258 -> rows_pad=512, grid=2, padded lanes in last block
    pred_m = _make_boxes(k3, (N,))
    target_m = _make_boxes(k4, (N,))
    loss_m = jax.block_until_ready(iou_loss(pred_m, target_m, reduction="sum", loss_type="iou"))
    ref_m = _iou_loss_ref(pred_m, target_m, reduction="sum", loss_type="iou")
    assert jnp.allclose(loss_m, ref_m, atol=1e-2, rtol=1e-4)

    print("KERNEL_OK")
</pallas_src>

<mosaic_0001>
module attributes {stable_mosaic.version = 11 : i64} {
  func.func @_iou_loss_kernel(%arg0: i32, %arg1: memref<4x8x128xf32, #tpu.memory_space<vmem>>, %arg2: memref<4x8x128xf32, #tpu.memory_space<vmem>>, %arg3: memref<8x128xf32, #tpu.memory_space<vmem>>) attributes {dimension_semantics = [#tpu.dimension_semantics<parallel>], iteration_bounds = array<i64: 1>, scalar_prefetch = 0 : i64, scratch_operands = 0 : i64, tpu.core_type = #tpu.core_type<tc>, window_params = [{transform_indices = @transform_0, window_bounds = array<i64: 4, 8, 128>}, {transform_indices = @transform_1, window_bounds = array<i64: 4, 8, 128>}, {transform_indices = @transform_2, window_bounds = array<i64: 8, 128>}]} {
    %c0 = arith.constant 0 : index
    %c0_0 = arith.constant 0 : index
    %c0_1 = arith.constant 0 : index
    %0 = vector.load %arg1[%c0, %c0_0, %c0_1] : memref<4x8x128xf32, #tpu.memory_space<vmem>>, vector<1x8x128xf32>
    %1 = vector.shape_cast %0 : vector<1x8x128xf32> to vector<8x128xf32>
    %c1 = arith.constant 1 : index
    %c0_2 = arith.constant 0 : index
    %c0_3 = arith.constant 0 : index
    %2 = vector.load %arg1[%c1, %c0_2, %c0_3] : memref<4x8x128xf32, #tpu.memory_space<vmem>>, vector<1x8x128xf32>
    %3 = vector.shape_cast %2 : vector<1x8x128xf32> to vector<8x128xf32>
    %c2 = arith.constant 2 : index
    %c0_4 = arith.constant 0 : index
    %c0_5 = arith.constant 0 : index
    %4 = vector.load %arg1[%c2, %c0_4, %c0_5] : memref<4x8x128xf32, #tpu.memory_space<vmem>>, vector<1x8x128xf32>
    %5 = vector.shape_cast %4 : vector<1x8x128xf32> to vector<8x128xf32>
    %c3 = arith.constant 3 : index
    %c0_6 = arith.constant 0 : index
    %c0_7 = arith.constant 0 : index
    %6 = vector.load %arg1[%c3, %c0_6, %c0_7] : memref<4x8x128xf32, #tpu.memory_space<vmem>>, vector<1x8x128xf32>
    %7 = vector.shape_cast %6 : vector<1x8x128xf32> to vector<8x128xf32>
    %c0_8 = arith.constant 0 : index
    %c0_9 = arith.constant 0 : index
    %c0_10 = arith.constant 0 : index
    %8 = vector.load %arg2[%c0_8, %c0_9, %c0_10] : memref<4x8x128xf32, #tpu.memory_space<vmem>>, vector<1x8x128xf32>
    %9 = vector.shape_cast %8 : vector<1x8x128xf32> to vector<8x128xf32>
    %c1_11 = arith.constant 1 : index
    %c0_12 = arith.constant 0 : index
    %c0_13 = arith.constant 0 : index
    %10 = vector.load %arg2[%c1_11, %c0_12, %c0_13] : memref<4x8x128xf32, #tpu.memory_space<vmem>>, vector<1x8x128xf32>
    %11 = vector.shape_cast %10 : vector<1x8x128xf32> to vector<8x128xf32>
    %c2_14 = arith.constant 2 : index
    %c0_15 = arith.constant 0 : index
    %c0_16 = arith.constant 0 : index
    %12 = vector.load %arg2[%c2_14, %c0_15, %c0_16] : memref<4x8x128xf32, #tpu.memory_space<vmem>>, vector<1x8x128xf32>
    %13 = vector.shape_cast %12 : vector<1x8x128xf32> to vector<8x128xf32>
    %c3_17 = arith.constant 3 : index
    %c0_18 = arith.constant 0 : index
    %c0_19 = arith.constant 0 : index
    %14 = vector.load %arg2[%c3_17, %c0_18, %c0_19] : memref<4x8x128xf32, #tpu.memory_space<vmem>>, vector<1x8x128xf32>
    %15 = vector.shape_cast %14 : vector<1x8x128xf32> to vector<8x128xf32>
    %cst = arith.constant 5.000000e-01 : f32
    %16 = vector.broadcast %cst : f32 to vector<8x128xf32>
    %17 = arith.mulf %5, %16 : vector<8x128xf32>
    %cst_20 = arith.constant 5.000000e-01 : f32
    %18 = vector.broadcast %cst_20 : f32 to vector<8x128xf32>
    %19 = arith.mulf %7, %18 : vector<8x128xf32>
    %cst_21 = arith.constant 5.000000e-01 : f32
    %20 = vector.broadcast %cst_21 : f32 to vector<8x128xf32>
    %21 = arith.mulf %13, %20 : vector<8x128xf32>
    %cst_22 = arith.constant 5.000000e-01 : f32
    %22 = vector.broadcast %cst_22 : f32 to vector<8x128xf32>
    %23 = arith.mulf %15, %22 : vector<8x128xf32>
    %24 = arith.subf %1, %17 : vector<8x128xf32>
    %25 = arith.subf %9, %21 : vector<8x128xf32>
    %26 = arith.maximumf %24, %25 : vector<8x128xf32>
    %27 = arith.subf %3, %19 : vector<8x128xf32>
    %28 = arith.subf %11, %23 : vector<8x128xf32>
    %29 = arith.maximumf %27, %28 : vector<8x128xf32>
    %30 = arith.addf %1, %17 : vector<8x128xf32>
    %31 = arith.addf %9, %21 : vector<8x128xf32>
    %32 = arith.minimumf %30, %31 : vector<8x128xf32>
    %33 = arith.addf %3, %19 : vector<8x128xf32>
    %34 = arith.addf %11, %23 : vector<8x128xf32>
    %35 = arith.minimumf %33, %34 : vector<8x128xf32>
    %36 = arith.mulf %5, %7 : vector<8x128xf32>
    %37 = arith.mulf %13, %15 : vector<8x128xf32>
    %38 = arith.cmpf olt, %26, %32 : vector<8x128xf32>
    %39 = arith.cmpf olt, %29, %35 : vector<8x128xf32>
    %40 = arith.andi %38, %39 : vector<8x128xi1>
    %cst_23 = arith.constant 1.000000e+00 : f32
    %cst_24 = arith.constant 0.000000e+00 : f32
    %41 = vector.broadcast %cst_23 : f32 to vector<8x128xf32>
    %42 = vector.broadcast %cst_24 : f32 to vector<8x128xf32>
    %43 = arith.select %40, %41, %42 : vector<8x128xi1>, vector<8x128xf32>
    %44 = arith.subf %32, %26 : vector<8x128xf32>
    %45 = arith.subf %35, %29 : vector<8x128xf32>
    %46 = arith.mulf %44, %45 : vector<8x128xf32>
    %47 = arith.mulf %46, %43 : vector<8x128xf32>
    %48 = arith.addf %36, %37 : vector<8x128xf32>
    %49 = arith.subf %48, %47 : vector<8x128xf32>
    %cst_25 = arith.constant 1.000000e-16 : f32
    %50 = vector.broadcast %cst_25 : f32 to vector<8x128xf32>
    %51 = arith.addf %49, %50 : vector<8x128xf32>
    %52 = tpu.reciprocal %51 {approx = true} : vector<8x128xf32> -> vector<8x128xf32>
    %53 = arith.mulf %51, %52 : vector<8x128xf32>
    %cst_26 = arith.constant 2.000000e+00 : f32
    %54 = vector.broadcast %cst_26 : f32 to vector<8x128xf32>
    %55 = arith.subf %54, %53 : vector<8x128xf32>
    %56 = arith.mulf %52, %55 : vector<8x128xf32>
    %57 = arith.mulf %47, %56 : vector<8x128xf32>
    %58 = arith.mulf %57, %57 : vector<8x128xf32>
    %cst_27 = arith.constant 1.000000e+00 : f32
    %59 = vector.broadcast %cst_27 : f32 to vector<8x128xf32>
    %60 = arith.subf %59, %58 : vector<8x128xf32>
    %c0_28 = arith.constant 0 : index
    %c0_29 = arith.constant 0 : index
    %61 = vector.load %arg3[%c0_28, %c0_29] : memref<8x128xf32, #tpu.memory_space<vmem>>, vector<8x128xf32>
    tpu.vector_store %arg3[%c0_28, %c0_29], %60 {strides = array<i32>} : memref<8x128xf32, #tpu.memory_space<vmem>>, vector<8x128xf32>,
    return
  }
  func.func @transform_0(%arg0: i32) -> (i32, i32, i32) {
    %c0_i32 = arith.constant 0 : i32
    %c0_i32_0 = arith.constant 0 : i32
    %c0_i32_1 = arith.constant 0 : i32
    return %c0_i32, %arg0, %c0_i32_0 : i32, i32, i32
  }
  func.func @transform_1(%arg0: i32) -> (i32, i32, i32) {
    %c0_i32 = arith.constant 0 : i32
    %c0_i32_0 = arith.constant 0 : i32
    %c0_i32_1 = arith.constant 0 : i32
    return %c0_i32, %arg0, %c0_i32_0 : i32, i32, i32
  }
  func.func @transform_2(%arg0: i32) -> (i32, i32) {
    %c0_i32 = arith.constant 0 : i32
    %c0_i32_0 = arith.constant 0 : i32
    return %arg0, %c0_i32 : i32, i32
  }
}

</mosaic_0001>

<llo_original>
// kernel: tpu_custom_call.1
$region0: #{tpu_custom_call.1}
  #allocation0 [shape = 'u32[]', space=smem, size = 0x4, offset = 0x4, fixed_abs, tag = 'smem constant byte address 0x4 - core index']
  #allocation1 [shape = 'u32[72,128]{1,0:T(1,128)}', space=vmem, size = 0x9000, scoped, tag = 'internal scratch']
  %s0 = inlined_call_operand.hbm [shape: f32[4,8,128], index: 0, kind: input, shape index: {}]
  %s1 = inlined_call_operand.hbm [shape: f32[4,8,128], index: 1, kind: input, shape index: {}]
  %s2 = inlined_call_operand.hbm [shape: f32[8,128], index: 2, kind: output, shape index: {}]
  %s3 = sld [smem:[#allocation0]]
  $region26: #{tpu_custom_call.1} parent=0
    _
  %s5 = ssub.s32 1, %s3
  %s6 = scalar_select 0, %s5, %s3
  $region1: #{tpu_custom_call.1} parent=0
    #allocation2 [shape = 'u8[16384]{0}', space=vmem, size = 0x4000, scoped, tag = 'input window, operand 0, single buffered']
    #allocation3 [shape = 's32[1]{0}', space=sflag, size = 0x4, scoped, tag = 'scoped memory for tpu_custom_call.1']
    #allocation4 [shape = 's32[1]{0}', space=sflag, size = 0x4, scoped, tag = 'scoped memory for tpu_custom_call.1']
    #allocation5 [shape = 'u8[16384]{0}', space=vmem, size = 0x4000, scoped, tag = 'input window, operand 1, single buffered']
    #allocation6 [shape = 's32[1]{0}', space=sflag, size = 0x4, scoped, tag = 'scoped memory for tpu_custom_call.1']
    #allocation7 [shape = 'u8[4096]{0}', space=vmem, size = 0x1000, scoped, tag = 'output window, operand 0, single buffered']
    %7 = vsyncpa [#allocation3], 0
    %8 = vsyncpa [#allocation6], 0
    %9 = vsyncpa [#allocation4], 0
    // Predicated region
    $region2: #{tpu_custom_call.1} parent=1 // pred_check
      _
    $region3: #{tpu_custom_call.1} parent=1 // pred_check_branch
      %11 = sbr.rel (0) target = $region5
    $region4: #{tpu_custom_call.1} parent=1 // pred_region
      %13 = vsyncadd [#allocation3], 0
      %s14 = sshll.u32 %s0, 4
      %s15 = int_to_ptr.hbm [resolvable:$true] %s14
      %s16 = sshll.u32 [#allocation2], 4
      %s17 = int_to_ptr.vmem [resolvable:$true] %s16
      %22 = dma.hbm_to_vmem [thread:$0]  %s15, 512, %s17, [#allocation3], 128, 128, 8
    $region5: #{tpu_custom_call.1} parent=1 // pred_fallthru
      _
    // Predicated region
    $region6: #{tpu_custom_call.1} parent=1 // pred_check
      _
    $region7: #{tpu_custom_call.1} parent=1 // pred_check_branch
      %24 = sbr.rel (0) target = $region9
    $region8: #{tpu_custom_call.1} parent=1 // pred_region
      %26 = vsyncadd [#allocation6], 0
      %s27 = sshll.u32 %s1, 4
      %s28 = int_to_ptr.hbm [resolvable:$true] %s27
      %s29 = sshll.u32 [#allocation5], 4
      %s30 = int_to_ptr.vmem [resolvable:$true] %s29
      %35 = dma.hbm_to_vmem [thread:$0]  %s28, 512, %s30, [#allocation6], 128, 128, 8
    $region9: #{tpu_custom_call.1} parent=1 // pred_fallthru
      _
    // Predicated region
    $region10: #{tpu_custom_call.1} parent=1 // pred_check
      _
    $region11: #{tpu_custom_call.1} parent=1 // pred_check_branch
      %37 = sbr.rel (0) target = $region13
    $region12: #{tpu_custom_call.1} parent=1 // pred_region
      %39 = dma.done [#allocation3], 512
    $region13: #{tpu_custom_call.1} parent=1 // pred_fallthru
      _
    // Predicated region
    $region14: #{tpu_custom_call.1} parent=1 // pred_check
      _
    $region15: #{tpu_custom_call.1} parent=1 // pred_check_branch
      %41 = sbr.rel (0) target = $region17
    $region16: #{tpu_custom_call.1} parent=1 // pred_region
      %43 = dma.done [#allocation6], 512
    $region17: #{tpu_custom_call.1} parent=1 // pred_fallthru
      _
    %v44 = vld [vmem:[#allocation2] sm:$0xff]
    %s45 = scalar_lea.vmem [#allocation2], 8
    %v46 = vld [vmem:[%s45] sm:$0xff]
    %s47 = scalar_lea.vmem [#allocation2], 16
    %v48 = vld [vmem:[%s47] sm:$0xff]
    %s49 = scalar_lea.vmem [#allocation2], 24
    %v50 = vld [vmem:[%s49] sm:$0xff]
    %v51 = vld [vmem:[#allocation5] sm:$0xff]
    %s52 = scalar_lea.vmem [#allocation5], 8
    %v53 = vld [vmem:[%s52] sm:$0xff]
    %s54 = scalar_lea.vmem [#allocation5], 16
    %v55 = vld [vmem:[%s54] sm:$0xff]
    %s56 = scalar_lea.vmem [#allocation5], 24
    %v57 = vld [vmem:[%s56] sm:$0xff]
    %v58 = vmul.f32 %v48, 0.5
    %v59 = vmul.f32 %v50, 0.5
    %v60 = vmul.f32 %v55, 0.5
    %v61 = vmul.f32 %v57, 0.5
    %v62 = vsub.f32 %v44, %v58
    %v63 = vsub.f32 %v51, %v60
    %v64 = vmax.f32 %v62, %v63
    %v65 = vsub.f32 %v46, %v59
    %v66 = vsub.f32 %v53, %v61
    %v67 = vmax.f32 %v65, %v66
    %v68 = vadd.f32 %v44, %v58
    %v69 = vadd.f32 %v51, %v60
    %v70 = vmin.f32 %v68, %v69
    %v71 = vadd.f32 %v46, %v59
    %v72 = vadd.f32 %v53, %v61
    %v73 = vmin.f32 %v71, %v72
    %v74 = vmul.f32 %v48, %v50
    %v75 = vmul.f32 %v55, %v57
    %vm76 = vcmp.lt.f32.partialorder %v64, %v70
    %vm77 = vcmp.lt.f32.partialorder %v67, %v73
    %vm78 = vmand %vm76, %vm77
    %v79 = vsel %vm78, 1.0, 0.0
    %v80 = vsub.f32 %v70, %v64
    %v81 = vsub.f32 %v73, %v67
    %v82 = vmul.f32 %v80, %v81
    %v83 = vmul.f32 %v82, %v79
    %v84 = vadd.f32 %v74, %v75
    %v85 = vsub.f32 %v84, %v83
    %v86 = vadd.f32 %v85, 1e-16
    %v87 = vrcp.pop %v86
    %v88 = vmul.f32 %v86, %v87
    %v89 = vsub.f32 2.0, %v88
    %v90 = vmul.f32 %v87, %v89
    %v91 = vmul.f32 %v83, %v90
    %v92 = vmul.f32 %v91, %v91
    %v93 = vsub.f32 1.0, %v92
    %94 = vst [vmem:[#allocation7] sm:$0xff] %v93
    // Predicated region
    $region18: #{tpu_custom_call.1} parent=1 // pred_check
      _
    $region19: #{tpu_custom_call.1} parent=1 // pred_check_branch
      %96 = sbr.rel (0) target = $region21
    $region20: #{tpu_custom_call.1} parent=1 // pred_region
      %98 = vsyncadd [#allocation4], 0
      %s100 = sshll.u32 [#allocation7], 4
      %s101 = int_to_ptr.vmem [resolvable:$true] %s100
      %s102 = sshll.u32 %s2, 4
      %s103 = int_to_ptr.hbm [resolvable:$true] %s102
      %105 = dma.vmem_to_hbm [thread:$0]  %s101, 128, %s103, [#allocation4]
    $region21: #{tpu_custom_call.1} parent=1 // pred_fallthru
      _
    // Predicated region
    $region22: #{tpu_custom_call.1} parent=1 // pred_check
      _
    $region23: #{tpu_custom_call.1} parent=1 // pred_check_branch
      %107 = sbr.rel (0) target = $region25
    $region24: #{tpu_custom_call.1} parent=1 // pred_region
      %109 = dma.done [#allocation4], 128
    $region25: #{tpu_custom_call.1} parent=1 // pred_fallthru
      _
    %110 = vsyncpa [#allocation3], 1
    %111 = vsyncpa [#allocation6], 1
    %112 = vsyncpa [#allocation4], 1

</llo_original>
